<compile_context>
chip_gen: v7x
topology: tpu7x:2x2x1
jax: 0.10.0
libtpu: 0.0.40
codegen_flags: <defaults>
</compile_context>

<pallas_src>
import functools

import jax
import jax.numpy as jnp
from jax.experimental import pallas as pl
from jax.experimental.pallas import tpu as pltpu


def _round_up(a, b):
    return (a + b - 1) // b * b


def _make_patch_embed_kernel(e_true, pad_e, eps=1e-5):
    inv_e = 1.0 / float(e_true)

    def kernel(p_ref, w_ref, prm_ref, o_ref):
        # p_ref  : (tm, Kp)  bf16 patch vectors (zero in padded K columns)
        # w_ref  : (Kp, Ep)  bf16 projection weight (zero in padded rows/cols)
        # prm_ref: (8, Ep)   f32; row0 = bias, row1 = gamma, row2 = beta
        #                    (zero in padded lanes)
        # o_ref  : (tm, Ep)
        y = jnp.dot(p_ref[...], w_ref[...], preferred_element_type=jnp.float32)

        prm = prm_ref[...].astype(jnp.float32)
        bias = prm[0:1, :]
        gamma = prm[1:2, :]
        beta = prm[2:3, :]

        y = y + bias  # padded lanes stay exactly 0 (zero W cols + zero bias)

        # Two-pass LayerNorm over the true embed dim (avoids E[x^2]-E[x]^2
        # cancellation; padded lanes contribute 0 to the sums).
        mean = jnp.sum(y, axis=-1, keepdims=True) * inv_e
        diff = y - mean
        if pad_e:
            lane = jax.lax.broadcasted_iota(jnp.int32, diff.shape, 1)
            diff = jnp.where(lane < e_true, diff, 0.0)
        var = jnp.sum(diff * diff, axis=-1, keepdims=True) * inv_e
        inv_std = jax.lax.rsqrt(var + eps)  # EUP slot -> essentially free

        out = diff * inv_std * gamma + beta  # padded lanes: gamma = beta = 0
        o_ref[...] = out.astype(o_ref.dtype)

    return kernel


def _pick_row_tile(m, k_pad, ep, out_itemsize, tm_cap=None):
    """Pick (tm, M_pad). Prefers tm | M (no pad / no post-slice HBM copies),
    sized from a VMEM budget safe under the v5e 16 MiB default scoped limit."""
    budget = 12 * 1024 * 1024
    resident = 2 * (k_pad * ep * 2) + 2 * (8 * ep * 4)    # weight + packed params
    per_row = 2 * (k_pad * 2) + 2 * (ep * out_itemsize)   # in + out tile, 2-buffered
    cap = max(16, min(1024, (budget - resident) // per_row))
    cap -= cap % 16
    if tm_cap is not None:
        cap = min(cap, max(16, tm_cap - tm_cap % 16))
    if m <= cap:
        return m, m                      # single block == full M dim (always legal)
    for t in range(cap, 127, -16):       # largest multiple-of-16 divisor of M
        if m % t == 0:
            return t, m
    return cap, _round_up(m, cap)        # fall back: pad M (rows sliced off later)


def patch_embed_forward(x, proj_w, proj_b, ln_g, ln_b, patch_size, *,
                        out_dtype=None, tm_cap=None, use_fast_path=True, eps=1e-5):
    """x: (B, C, H, W) NCHW (PyTorch layout). Returns (y, (Hp, Wp)), y: (B, N, E).

    Wrap calls in jax.jit so the relayout glue can fuse into the pallas_call.
    """
    B, C, H, W = x.shape
    ph, pw = patch_size
    assert H % ph == 0 and W % pw == 0
    Hp, Wp = H // ph, W // pw
    N = Hp * Wp
    E = proj_w.shape[0]
    K = C * ph * pw
    M = B * N
    out_dtype = x.dtype if out_dtype is None else out_dtype
    out_itemsize = jnp.dtype(out_dtype).itemsize

    # --- glue: cast to bf16 FIRST (halves relayout traffic), then extract
    # non-overlapping patches as (M, K) in (C, ph, pw) order, matching the
    # Conv2d weight layout (E, C, ph, pw). With allow_input_fusion this chain
    # can be folded into the kernel's block fetches instead of hitting HBM. ---
    xb = x.astype(jnp.bfloat16)
    patches = (xb.reshape(B, C, Hp, ph, Wp, pw)
                 .transpose(0, 2, 4, 1, 3, 5)
                 .reshape(M, K))

    # conv weight (E, C, ph, pw) -> matmul weight (K, E), bf16 for the MXU.
    w_mat = proj_w.reshape(E, K).T.astype(jnp.bfloat16)

    # --- zero-pad K (contraction) and E (lanes) to multiples of 128:
    #     lane-aligned loads / lane-dense stores, numerically exact. ---
    Ep = max(128, _round_up(E, 128))
    Kp = max(128, _round_up(K, 128))
    if Kp != K or Ep != E:
        w_mat = jnp.pad(w_mat, ((0, Kp - K), (0, Ep - E)))
    if Kp != K:
        patches = jnp.pad(patches, ((0, 0), (0, Kp - K)))

    # packed LN/bias params: one (8, Ep) f32 tile (one DMA instead of three).
    prm = jnp.zeros((8, Ep), jnp.float32)
    prm = prm.at[0, :E].set(proj_b.astype(jnp.float32))
    prm = prm.at[1, :E].set(ln_g.astype(jnp.float32))
    prm = prm.at[2, :E].set(ln_b.astype(jnp.float32))

    # --- row tiling from VMEM budget; prefer a divisor of M (no pad/slice). ---
    tm, M_pad = _pick_row_tile(M, Kp, Ep, out_itemsize, tm_cap)
    if M_pad != M:
        patches = jnp.pad(patches, ((0, M_pad - M), (0, 0)))

    grid = (M_pad // tm,)

    def _resident_spec(shape, fast):
        # Grid-invariant operand: single-buffer it on the fast path
        # (double-buffering a constant block only wastes VMEM).
        if fast:
            try:
                return pl.BlockSpec(shape, lambda i: (0, 0),
                                    pipeline_mode=pl.Buffered(1))
            except TypeError:
                pass
        return pl.BlockSpec(shape, lambda i: (0, 0))

    def _build(fast):
        in_specs = [
            pl.BlockSpec((tm, Kp), lambda i: (i, 0)),   # streamed patch tile
            _resident_spec((Kp, Ep), fast),             # weight (VMEM resident)
            _resident_spec((8, Ep), fast),              # packed bias/gamma/beta
        ]
        out_specs = pl.BlockSpec((tm, Ep), lambda i: (i, 0))

        cparams = dict(dimension_semantics=("parallel",))
        if fast:
            # Let XLA fold the patch-relayout producer into the kernel's
            # per-block input fetches (no materialized (M, K) array in HBM).
            cparams["allow_input_fusion"] = [True, False, False]

        cost = pl.CostEstimate(
            flops=2 * M_pad * Kp * Ep,
            transcendentals=M_pad,
            bytes_accessed=(M_pad * Kp * 2 + Kp * Ep * 2 + 8 * Ep * 4
                            + M_pad * Ep * out_itemsize),
        )

        return pl.pallas_call(
            _make_patch_embed_kernel(E, Ep - E, eps),
            out_shape=jax.ShapeDtypeStruct((M_pad, Ep), out_dtype),
            grid_spec=pltpu.PrefetchScalarGridSpec(
                num_scalar_prefetch=0,
                grid=grid,
                in_specs=in_specs,
                out_specs=out_specs,
            ),
            compiler_params=pltpu.CompilerParams(**cparams),
            cost_estimate=cost,
        )

    out = _build(use_fast_path)(patches, w_mat, prm)

    y = out
    if M_pad != M or Ep != E:
        y = y[:M, :E]          # no-op (elided) when tm | M and E % 128 == 0
    y = y.reshape(B, N, E)
    return y, (Hp, Wp)


if __name__ == "__main__":
    # Small shapes consistent with the module: img_size=16, patch_size=8,
    # in_chans=4, embed_dim=32, batch=2  -> Hp = Wp = 2, num_patches = 4.
    B, C, H, W = 2, 4, 16, 16
    ph = pw = 8
    E = 32
    K = C * ph * pw

    key = jax.random.PRNGKey(0)
    k_x, k_w, k_b = jax.random.split(key, 3)

    x = jax.random.normal(k_x, (B, C, H, W), dtype=jnp.float32)
    proj_w = jax.random.normal(k_w, (E, C, ph, pw), dtype=jnp.float32) * 0.02
    proj_b = jax.random.normal(k_b, (E,), dtype=jnp.float32) * 0.02
    ln_g = jnp.ones((E,), dtype=jnp.float32)
    ln_b = jnp.zeros((E,), dtype=jnp.float32)

    def run(fast):
        fwd = jax.jit(functools.partial(
            patch_embed_forward, patch_size=(ph, pw), use_fast_path=fast))
        y, hw = fwd(x, proj_w, proj_b, ln_g, ln_b)
        jax.block_until_ready(y)
        return y, hw

    try:
        y, hw = run(True)
    except Exception:
        # Fall back to the plain (no input-fusion / no single-buffering) path
        # if the optional Mosaic features are unavailable on this version.
        y, hw = run(False)
    Hp, Wp = int(hw[0]), int(hw[1])

    # sanity vs pure-JAX f32 reference (kernel matmul runs in bf16 -> loose tol)
    patches_ref = (
        x.reshape(B, C, Hp, ph, Wp, pw)
        .transpose(0, 2, 4, 1, 3, 5)
        .reshape(B, Hp * Wp, K)
    )
    proj_ref = patches_ref @ proj_w.reshape(E, K).T + proj_b
    mu = proj_ref.mean(-1, keepdims=True)
    var = ((proj_ref - mu) ** 2).mean(-1, keepdims=True)
    ref = (proj_ref - mu) / jnp.sqrt(var + 1e-5) * ln_g + ln_b

    assert y.shape == (B, Hp * Wp, E)
    assert (Hp, Wp) == (H // ph, W // pw)
    assert bool(jnp.all(jnp.isfinite(y)))
    assert jnp.allclose(y, ref, atol=3e-2, rtol=3e-2)

    print("KERNEL_OK")
</pallas_src>

<mosaic_0001>
module attributes {stable_mosaic.version = 11 : i64} {
  func.func @kernel(%arg0: i32, %arg1: memref<8x256xbf16, #tpu.memory_space<vmem>>, %arg2: memref<256x128xbf16, #tpu.memory_space<vmem>>, %arg3: memref<8x128xf32, #tpu.memory_space<vmem>>, %arg4: memref<8x128xf32, #tpu.memory_space<vmem>>) attributes {dimension_semantics = [#tpu.dimension_semantics<parallel>], iteration_bounds = array<i64: 1>, scalar_prefetch = 0 : i64, scratch_operands = 0 : i64, tpu.core_type = #tpu.core_type<tc>, window_params = [{transform_indices = @transform_0, window_bounds = array<i64: 8, 256>}, {pipeline_mode = #tpu.pipeline_mode<synchronous>, transform_indices = @transform_1, window_bounds = array<i64: 256, 128>}, {pipeline_mode = #tpu.pipeline_mode<synchronous>, transform_indices = @transform_2, window_bounds = array<i64: 8, 128>}, {transform_indices = @transform_3, window_bounds = array<i64: 8, 128>}]} {
    %c0 = arith.constant 0 : index
    %c0_0 = arith.constant 0 : index
    %0 = vector.load %arg1[%c0, %c0_0] : memref<8x256xbf16, #tpu.memory_space<vmem>>, vector<8x256xbf16>
    %c0_1 = arith.constant 0 : index
    %c0_2 = arith.constant 0 : index
    %1 = vector.load %arg2[%c0_1, %c0_2] : memref<256x128xbf16, #tpu.memory_space<vmem>>, vector<256x128xbf16>
    %cst = arith.constant dense<0.000000e+00> : vector<8x128xf32>
    %2 = tpu.matmul %0, %1, %cst {dimension_numbers = #tpu.dot_dimension_numbers<[1], [0], [0], [1], [0, 0, 1, 1], [], []>} : vector<8x256xbf16>, vector<256x128xbf16>, vector<8x128xf32> -> vector<8x128xf32>
    %c0_3 = arith.constant 0 : index
    %c0_4 = arith.constant 0 : index
    %3 = vector.load %arg3[%c0_3, %c0_4] : memref<8x128xf32, #tpu.memory_space<vmem>>, vector<8x128xf32>
    %4 = vector.extract_strided_slice %3 {offsets = [0, 0], sizes = [1, 128], strides = [1, 1]} : vector<8x128xf32> to vector<1x128xf32>
    %5 = vector.extract_strided_slice %3 {offsets = [1, 0], sizes = [1, 128], strides = [1, 1]} : vector<8x128xf32> to vector<1x128xf32>
    %6 = vector.extract_strided_slice %3 {offsets = [2, 0], sizes = [1, 128], strides = [1, 1]} : vector<8x128xf32> to vector<1x128xf32>
    %7 = vector.broadcast %4 : vector<1x128xf32> to vector<8x128xf32>
    %8 = arith.addf %2, %7 : vector<8x128xf32>
    %cst_5 = arith.constant dense<0.000000e+00> : vector<8xf32>
    %9 = vector.multi_reduction <add>, %8, %cst_5 [1] : vector<8x128xf32> to vector<8xf32>
    %10 = vector.shape_cast %9 : vector<8xf32> to vector<8x1xf32>
    %cst_6 = arith.constant 3.125000e-02 : f32
    %11 = vector.broadcast %cst_6 : f32 to vector<8x1xf32>
    %12 = arith.mulf %10, %11 : vector<8x1xf32>
    %13 = vector.broadcast %12 : vector<8x1xf32> to vector<8x128xf32>
    %14 = arith.subf %8, %13 : vector<8x128xf32>
    %15 = tpu.iota {dimensions = array<i32: 1>} : vector<8x128xi32>
    %c32_i32 = arith.constant 32 : i32
    %16 = vector.broadcast %c32_i32 : i32 to vector<8x128xi32>
    %17 = arith.cmpi slt, %15, %16 : vector<8x128xi32>
    %cst_7 = arith.constant 0.000000e+00 : f32
    %18 = vector.broadcast %cst_7 : f32 to vector<8x128xf32>
    %19 = arith.select %17, %14, %18 : vector<8x128xi1>, vector<8x128xf32>
    %20 = arith.mulf %19, %19 : vector<8x128xf32>
    %cst_8 = arith.constant dense<0.000000e+00> : vector<8xf32>
    %21 = vector.multi_reduction <add>, %20, %cst_8 [1] : vector<8x128xf32> to vector<8xf32>
    %22 = vector.shape_cast %21 : vector<8xf32> to vector<8x1xf32>
    %cst_9 = arith.constant 3.125000e-02 : f32
    %23 = vector.broadcast %cst_9 : f32 to vector<8x1xf32>
    %24 = arith.mulf %22, %23 : vector<8x1xf32>
    %cst_10 = arith.constant 9.99999974E-6 : f32
    %25 = vector.broadcast %cst_10 : f32 to vector<8x1xf32>
    %26 = arith.addf %24, %25 : vector<8x1xf32>
    %27 = math.rsqrt %26 : vector<8x1xf32>
    %28 = vector.broadcast %27 : vector<8x1xf32> to vector<8x128xf32>
    %29 = arith.mulf %19, %28 : vector<8x128xf32>
    %30 = vector.broadcast %5 : vector<1x128xf32> to vector<8x128xf32>
    %31 = arith.mulf %29, %30 : vector<8x128xf32>
    %32 = vector.broadcast %6 : vector<1x128xf32> to vector<8x128xf32>
    %33 = arith.addf %31, %32 : vector<8x128xf32>
    %c0_11 = arith.constant 0 : index
    %c0_12 = arith.constant 0 : index
    %34 = vector.load %arg4[%c0_11, %c0_12] : memref<8x128xf32, #tpu.memory_space<vmem>>, vector<8x128xf32>
    tpu.vector_store %arg4[%c0_11, %c0_12], %33 {strides = array<i32>} : memref<8x128xf32, #tpu.memory_space<vmem>>, vector<8x128xf32>,
    return
  }
  func.func @transform_0(%arg0: i32) -> (i32, i32) {
    %c0_i32 = arith.constant 0 : i32
    %c0_i32_0 = arith.constant 0 : i32
    return %arg0, %c0_i32 : i32, i32
  }
  func.func @transform_1(%arg0: i32) -> (i32, i32) {
    %c0_i32 = arith.constant 0 : i32
    %c0_i32_0 = arith.constant 0 : i32
    %c0_i32_1 = arith.constant 0 : i32
    return %c0_i32, %c0_i32_0 : i32, i32
  }
  func.func @transform_2(%arg0: i32) -> (i32, i32) {
    %c0_i32 = arith.constant 0 : i32
    %c0_i32_0 = arith.constant 0 : i32
    %c0_i32_1 = arith.constant 0 : i32
    return %c0_i32, %c0_i32_0 : i32, i32
  }
  func.func @transform_3(%arg0: i32) -> (i32, i32) {
    %c0_i32 = arith.constant 0 : i32
    %c0_i32_0 = arith.constant 0 : i32
    return %arg0, %c0_i32 : i32, i32
  }
}

module attributes {stable_mosaic.version = 11 : i64} {
  func.func @kernel(%arg0: i32, %arg1: memref<8x256xbf16, #tpu.memory_space<vmem>>, %arg2: memref<256x128xbf16, #tpu.memory_space<vmem>>, %arg3: memref<8x128xf32, #tpu.memory_space<vmem>>, %arg4: memref<8x128xf32, #tpu.memory_space<vmem>>) attributes {dimension_semantics = [#tpu.dimension_semantics<parallel>], iteration_bounds = array<i64: 1>, scalar_prefetch = 0 : i64, scratch_operands = 0 : i64, tpu.core_type = #tpu.core_type<tc>, window_params = [{transform_indices = @transform_0, window_bounds = array<i64: 8, 256>}, {pipeline_mode = #tpu.pipeline_mode<synchronous>, transform_indices = @transform_1, window_bounds = array<i64: 256, 128>}, {pipeline_mode = #tpu.pipeline_mode<synchronous>, transform_indices = @transform_2, window_bounds = array<i64: 8, 128>}, {transform_indices = @transform_3, window_bounds = array<i64: 8, 128>}]} {
    %c0 = arith.constant 0 : index
    %c0_0 = arith.constant 0 : index
    %0 = vector.load %arg1[%c0, %c0_0] : memref<8x256xbf16, #tpu.memory_space<vmem>>, vector<8x256xbf16>
    %c0_1 = arith.constant 0 : index
    %c0_2 = arith.constant 0 : index
    %1 = vector.load %arg2[%c0_1, %c0_2] : memref<256x128xbf16, #tpu.memory_space<vmem>>, vector<256x128xbf16>
    %cst = arith.constant dense<0.000000e+00> : vector<8x128xf32>
    %2 = tpu.matmul %0, %1, %cst {dimension_numbers = #tpu.dot_dimension_numbers<[1], [0], [0], [1], [0, 0, 1, 1], [], []>} : vector<8x256xbf16>, vector<256x128xbf16>, vector<8x128xf32> -> vector<8x128xf32>
    %c0_3 = arith.constant 0 : index
    %c0_4 = arith.constant 0 : index
    %3 = vector.load %arg3[%c0_3, %c0_4] : memref<8x128xf32, #tpu.memory_space<vmem>>, vector<8x128xf32>
    %4 = vector.extract_strided_slice %3 {offsets = [0, 0], sizes = [1, 128], strides = [1, 1]} : vector<8x128xf32> to vector<1x128xf32>
    %5 = vector.extract_strided_slice %3 {offsets = [1, 0], sizes = [1, 128], strides = [1, 1]} : vector<8x128xf32> to vector<1x128xf32>
    %6 = vector.extract_strided_slice %3 {offsets = [2, 0], sizes = [1, 128], strides = [1, 1]} : vector<8x128xf32> to vector<1x128xf32>
    %7 = vector.broadcast %4 : vector<1x128xf32> to vector<8x128xf32>
    %8 = arith.addf %2, %7 : vector<8x128xf32>
    %cst_5 = arith.constant dense<0.000000e+00> : vector<8xf32>
    %9 = vector.multi_reduction <add>, %8, %cst_5 [1] : vector<8x128xf32> to vector<8xf32>
    %10 = vector.shape_cast %9 : vector<8xf32> to vector<8x1xf32>
    %cst_6 = arith.constant 3.125000e-02 : f32
    %11 = vector.broadcast %cst_6 : f32 to vector<8x1xf32>
    %12 = arith.mulf %10, %11 : vector<8x1xf32>
    %13 = vector.broadcast %12 : vector<8x1xf32> to vector<8x128xf32>
    %14 = arith.subf %8, %13 : vector<8x128xf32>
    %15 = tpu.iota {dimensions = array<i32: 1>} : vector<8x128xi32>
    %c32_i32 = arith.constant 32 : i32
    %16 = vector.broadcast %c32_i32 : i32 to vector<8x128xi32>
    %17 = arith.cmpi slt, %15, %16 : vector<8x128xi32>
    %cst_7 = arith.constant 0.000000e+00 : f32
    %18 = vector.broadcast %cst_7 : f32 to vector<8x128xf32>
    %19 = arith.select %17, %14, %18 : vector<8x128xi1>, vector<8x128xf32>
    %20 = arith.mulf %19, %19 : vector<8x128xf32>
    %cst_8 = arith.constant dense<0.000000e+00> : vector<8xf32>
    %21 = vector.multi_reduction <add>, %20, %cst_8 [1] : vector<8x128xf32> to vector<8xf32>
    %22 = vector.shape_cast %21 : vector<8xf32> to vector<8x1xf32>
    %cst_9 = arith.constant 3.125000e-02 : f32
    %23 = vector.broadcast %cst_9 : f32 to vector<8x1xf32>
    %24 = arith.mulf %22, %23 : vector<8x1xf32>
    %cst_10 = arith.constant 9.99999974E-6 : f32
    %25 = vector.broadcast %cst_10 : f32 to vector<8x1xf32>
    %26 = arith.addf %24, %25 : vector<8x1xf32>
    %27 = math.rsqrt %26 : vector<8x1xf32>
    %28 = vector.broadcast %27 : vector<8x1xf32> to vector<8x128xf32>
    %29 = arith.mulf %19, %28 : vector<8x128xf32>
    %30 = vector.broadcast %5 : vector<1x128xf32> to vector<8x128xf32>
    %31 = arith.mulf %29, %30 : vector<8x128xf32>
    %32 = vector.broadcast %6 : vector<1x128xf32> to vector<8x128xf32>
    %33 = arith.addf %31, %32 : vector<8x128xf32>
    %c0_11 = arith.constant 0 : index
    %c0_12 = arith.constant 0 : index
    %34 = vector.load %arg4[%c0_11, %c0_12] : memref<8x128xf32, #tpu.memory_space<vmem>>, vector<8x128xf32>
    tpu.vector_store %arg4[%c0_11, %c0_12], %33 {strides = array<i32>} : memref<8x128xf32, #tpu.memory_space<vmem>>, vector<8x128xf32>,
    return
  }
  func.func @transform_0(%arg0: i32) -> (i32, i32) {
    %c0_i32 = arith.constant 0 : i32
    %c0_i32_0 = arith.constant 0 : i32
    return %arg0, %c0_i32 : i32, i32
  }
  func.func @transform_1(%arg0: i32) -> (i32, i32) {
    %c0_i32 = arith.constant 0 : i32
    %c0_i32_0 = arith.constant 0 : i32
    %c0_i32_1 = arith.constant 0 : i32
    return %c0_i32, %c0_i32_0 : i32, i32
  }
  func.func @transform_2(%arg0: i32) -> (i32, i32) {
    %c0_i32 = arith.constant 0 : i32
    %c0_i32_0 = arith.constant 0 : i32
    %c0_i32_1 = arith.constant 0 : i32
    return %c0_i32, %c0_i32_0 : i32, i32
  }
  func.func @transform_3(%arg0: i32) -> (i32, i32) {
    %c0_i32 = arith.constant 0 : i32
    %c0_i32_0 = arith.constant 0 : i32
    return %arg0, %c0_i32 : i32, i32
  }
}

</mosaic_0001>

<llo_original>
// kernel: patch_embed_forward.1
$region0: #{patch_embed_forward.1}
  #allocation0 [shape = 'u32[]', space=smem, size = 0x4, offset = 0x4, fixed_abs, tag = 'smem constant byte address 0x4 - core index']
  #allocation1 [shape = 'u32[144,128]{1,0:T(1,128)}', space=vmem, size = 0x12000, scoped, tag = 'internal scratch']
  %s0 = inlined_call_operand.vmem [shape: bf16[8,256], index: 0, kind: input, shape index: {}]
  %s1 = inlined_call_operand.vmem [shape: bf16[256,128], index: 1, kind: input, shape index: {}]
  %s2 = inlined_call_operand.vmem [shape: f32[8,128], index: 2, kind: input, shape index: {}]
  %s3 = inlined_call_operand.hbm [shape: f32[8,128], index: 3, kind: output, shape index: {}]
  %s4 = sld [smem:[#allocation0]]
  $region22: #{patch_embed_forward.1} parent=0
    _
  %s6 = ssub.s32 1, %s4
  %s7 = scalar_select 0, %s6, %s4
  $region1: #{patch_embed_forward.1} parent=0
    #allocation2 [shape = 'u8[4096]{0}', space=vmem, size = 0x1000, scoped, tag = 'output window, operand 0, single buffered']
    #allocation3 [shape = 's32[1]{0}', space=sflag, size = 0x4, scoped, tag = 'scoped memory for patch_embed_forward.1']
    %8 = vsyncpa [#allocation3], 0
    // Predicated region
    $region2: #{patch_embed_forward.1} parent=1 // pred_check
      _
    $region3: #{patch_embed_forward.1} parent=1 // pred_check_branch
      %10 = sbr.rel (0) target = $region5
    $region4: #{patch_embed_forward.1} parent=1 // pred_region
      _
    $region5: #{patch_embed_forward.1} parent=1 // pred_fallthru
      _
    // Predicated region
    $region6: #{patch_embed_forward.1} parent=1 // pred_check
      _
    $region7: #{patch_embed_forward.1} parent=1 // pred_check_branch
      %12 = sbr.rel (0) target = $region9
    $region8: #{patch_embed_forward.1} parent=1 // pred_region
      _
    $region9: #{patch_embed_forward.1} parent=1 // pred_fallthru
      _
    // Predicated region
    $region10: #{patch_embed_forward.1} parent=1 // pred_check
      _
    $region11: #{patch_embed_forward.1} parent=1 // pred_check_branch
      %14 = sbr.rel (0) target = $region13
    $region12: #{patch_embed_forward.1} parent=1 // pred_region
      _
    $region13: #{patch_embed_forward.1} parent=1 // pred_fallthru
      _
    %v16 = vld [vmem:[%s0] sm:$0xff]
    %v17 = vld [vmem:[%s1] sm:$0xf]
    %v18 = vld [vmem:[%s1 + $0x4] sm:$0xf]
    %v19 = vld [vmem:[%s1 + $0x8] sm:$0xf]
    %v20 = vld [vmem:[%s1 + $0xc] sm:$0xf]
    %v21 = vld [vmem:[%s1 + $0x10] sm:$0xf]
    %v22 = vld [vmem:[%s1 + $0x14] sm:$0xf]
    %v23 = vld [vmem:[%s1 + $0x18] sm:$0xf]
    %v24 = vld [vmem:[%s1 + $0x1c] sm:$0xf]
    %v25 = vld [vmem:[%s1 + $0x20] sm:$0xf]
    %v26 = vld [vmem:[%s1 + $0x24] sm:$0xf]
    %v27 = vld [vmem:[%s1 + $0x28] sm:$0xf]
    %v28 = vld [vmem:[%s1 + $0x2c] sm:$0xf]
    %v29 = vld [vmem:[%s1 + $0x30] sm:$0xf]
    %v30 = vld [vmem:[%s1 + $0x34] sm:$0xf]
    %v31 = vld [vmem:[%s1 + $0x38] sm:$0xf]
    %v32 = vld [vmem:[%s1 + $0x3c] sm:$0xf]
    %v33 = vld [vmem:[%s1 + $0x40] sm:$0xf]
    %v34 = vld [vmem:[%s1 + $0x44] sm:$0xf]
    %v35 = vld [vmem:[%s1 + $0x48] sm:$0xf]
    %v36 = vld [vmem:[%s1 + $0x4c] sm:$0xf]
    %v37 = vld [vmem:[%s1 + $0x50] sm:$0xf]
    %v38 = vld [vmem:[%s1 + $0x54] sm:$0xf]
    %v39 = vld [vmem:[%s1 + $0x58] sm:$0xf]
    %v40 = vld [vmem:[%s1 + $0x5c] sm:$0xf]
    %v41 = vld [vmem:[%s1 + $0x60] sm:$0xf]
    %v42 = vld [vmem:[%s1 + $0x64] sm:$0xf]
    %v43 = vld [vmem:[%s1 + $0x68] sm:$0xf]
    %v44 = vld [vmem:[%s1 + $0x6c] sm:$0xf]
    %v45 = vld [vmem:[%s1 + $0x70] sm:$0xf]
    %v46 = vld [vmem:[%s1 + $0x74] sm:$0xf]
    %v47 = vld [vmem:[%s1 + $0x78] sm:$0xf]
    %v48 = vld [vmem:[%s1 + $0x7c] sm:$0xf]
    %v49 = vld [vmem:[%s2] sm:$0xff]
    %v50 = vlaneseq
    %v51 = vshrl.u32 %v50, 7
    %v52 = vsub.s32 0, %v51
    %v53 = vrot.slane %v49, %v52
    %v55 = vunpack.c.l.b16 %v16
    %v56 = vunpack.c.h.b16 %v16
    %v57 = vpack.c.b16 %v55, %v55
    %v58 = vpack.c.b16 %v56, %v56
    %v93 = vunpack.c.l.b16 %v17
    %v94 = vunpack.c.l.b16 %v18
    %v95 = vunpack.c.l.b16 %v19
    %v96 = vunpack.c.l.b16 %v20
    %v97 = vunpack.c.l.b16 %v21
    %v98 = vunpack.c.l.b16 %v22
    %v99 = vunpack.c.l.b16 %v23
    %v100 = vunpack.c.l.b16 %v24
    %v101 = vunpack.c.l.b16 %v25
    %v102 = vunpack.c.l.b16 %v26
    %v103 = vunpack.c.l.b16 %v27
    %v104 = vunpack.c.l.b16 %v28
    %v105 = vunpack.c.l.b16 %v29
    %v106 = vunpack.c.l.b16 %v30
    %v107 = vunpack.c.l.b16 %v31
    %v108 = vunpack.c.l.b16 %v32
    %v109 = vunpack.c.l.b16 %v33
    %v110 = vunpack.c.l.b16 %v34
    %v111 = vunpack.c.l.b16 %v35
    %v112 = vunpack.c.l.b16 %v36
    %v113 = vunpack.c.l.b16 %v37
    %v114 = vunpack.c.l.b16 %v38
    %v115 = vunpack.c.l.b16 %v39
    %v116 = vunpack.c.l.b16 %v40
    %v117 = vunpack.c.l.b16 %v41
    %v118 = vunpack.c.l.b16 %v42
    %v119 = vunpack.c.l.b16 %v43
    %v120 = vunpack.c.l.b16 %v44
    %v121 = vunpack.c.l.b16 %v45
    %v122 = vunpack.c.l.b16 %v46
    %v123 = vunpack.c.l.b16 %v47
    %v124 = vunpack.c.l.b16 %v48
    %v125 = vpack.c.b16 %v94, %v93
    %v126 = vpack.c.b16 %v96, %v95
    %v127 = vpack.c.b16 %v98, %v97
    %v128 = vpack.c.b16 %v100, %v99
    %v129 = vpack.c.b16 %v102, %v101
    %v130 = vpack.c.b16 %v104, %v103
    %v131 = vpack.c.b16 %v106, %v105
    %v132 = vpack.c.b16 %v108, %v107
    %v133 = vpack.c.b16 %v110, %v109
    %v134 = vpack.c.b16 %v112, %v111
    %v135 = vpack.c.b16 %v114, %v113
    %v136 = vpack.c.b16 %v116, %v115
    %v137 = vpack.c.b16 %v118, %v117
    %v138 = vpack.c.b16 %v120, %v119
    %v139 = vpack.c.b16 %v122, %v121
    %v140 = vpack.c.b16 %v124, %v123
    %157 = vmatprep.subr.bf16.mxu0 0
    %158 = vmatpush1.bf16.msra.mxu0 %v125
    %159 = vmatprep.subr.bf16.mxu0 0
    %160 = vmatpush1.bf16.msra.mxu0 %v126
    %161 = vmatprep.subr.bf16.mxu0 0
    %162 = vmatpush1.bf16.msra.mxu0 %v127
    %163 = vmatprep.subr.bf16.mxu0 0
    %164 = vmatpush1.bf16.msra.mxu0 %v128
    %165 = vmatprep.subr.bf16.mxu0 0
    %166 = vmatpush1.bf16.msra.mxu0 %v129
    %167 = vmatprep.subr.bf16.mxu0 0
    %168 = vmatpush1.bf16.msra.mxu0 %v130
    %169 = vmatprep.subr.bf16.mxu0 0
    %170 = vmatpush1.bf16.msra.mxu0 %v131
    %171 = vmatprep.subr.bf16.mxu0 0
    %172 = vmatpush1.bf16.msra.mxu0 %v132
    %173 = vmatprep.subr.bf16.mxu0 0
    %174 = vmatpush1.bf16.msra.mxu0 %v133
    %175 = vmatprep.subr.bf16.mxu0 0
    %176 = vmatpush1.bf16.msra.mxu0 %v134
    %177 = vmatprep.subr.bf16.mxu0 0
    %178 = vmatpush1.bf16.msra.mxu0 %v135
    %179 = vmatprep.subr.bf16.mxu0 0
    %180 = vmatpush1.bf16.msra.mxu0 %v136
    %181 = vmatprep.subr.bf16.mxu0 0
    %182 = vmatpush1.bf16.msra.mxu0 %v137
    %183 = vmatprep.subr.bf16.mxu0 0
    %184 = vmatpush1.bf16.msra.mxu0 %v138
    %185 = vmatprep.subr.bf16.mxu0 0
    %186 = vmatpush1.bf16.msra.mxu0 %v139
    %187 = vmatprep.subr.bf16.mxu0 0
    %188 = vmatpush1.bf16.msra.mxu0 %v140
    %189 = vmatprep.mubr.bf16.mxu0 %v58
    %190 = vmatmul.mubr.bf16.gmra.mrb[0].mxu0 %v57
    %v191 = vpop.f32.mrb[0].mxu0
    %v192 = vadd.f32 %v53, %v191
    %v193 = vpop.f32.mrb[0].mxu0
    %v194 = vpop.f32.mrb[0].mxu0
    %v195 = vpop.f32.mrb[0].mxu0
    %196 = vdwg.mxu0
    %197 = vadd.xlane.f32.xlu0 %v192
    %v198 = vpop.xlane.xlu0 %197
    %v199 = vmul.f32 %v198, 0.03125
    %v200 = vsub.f32 %v192, %v199
    %v201 = vlaneseq
    %v202 = vand.u32 %v201, 127
    %vm203 = vcmp.lt.s32.totalorder %v202, 32
    %v204 = vsel %vm203, %v200, 0.0
    %v205 = vmul.f32 %v204, %v204
    %206 = vadd.xlane.f32.xlu0 %v205
    %v207 = vpop.xlane.xlu0 %206
    %v208 = vmul.f32 %v207, 0.03125
    %v209 = vadd.f32 %v208, 1e-05
    %v210 = vrsqrt.pop %v209
    %v211 = vmul.f32 %v204, %v210
    %v212 = vlaneseq
    %v213 = vshrl.u32 %v212, 7
    %v214 = vsub.s32 1, %v213
    %v215 = vrot.slane %v49, %v214
    %v216 = vmul.f32 %v211, %v215
    %v217 = vlaneseq
    %v218 = vshrl.u32 %v217, 7
    %v219 = vsub.s32 2, %v218
    %v220 = vrot.slane %v49, %v219
    %v221 = vadd.f32 %v216, %v220
    %222 = vst [vmem:[#allocation2] sm:$0xff] %v221
    // Predicated region
    $region14: #{patch_embed_forward.1} parent=1 // pred_check
      _
    $region15: #{patch_embed_forward.1} parent=1 // pred_check_branch
      %224 = sbr.rel (0) target = $region17
    $region16: #{patch_embed_forward.1} parent=1 // pred_region
      %s226 = ssub.s32 128, 128
      %227 = vsyncadd [#allocation3], %s226
      %s229 = sshll.u32 [#allocation2], 4
      %s230 = int_to_ptr.vmem [resolvable:$true] %s229
      %232 = dma.vmem_to_hbm [thread:$0]  %s230, 128, %s3, [#allocation3]
    $region17: #{patch_embed_forward.1} parent=1 // pred_fallthru
      _
    // Predicated region
    $region18: #{patch_embed_forward.1} parent=1 // pred_check
      _
    $region19: #{patch_embed_forward.1} parent=1 // pred_check_branch
      %234 = sbr.rel (0) target = $region21
    $region20: #{patch_embed_forward.1} parent=1 // pred_region
      %235 = dma.done [#allocation3], 128
    $region21: #{patch_embed_forward.1} parent=1 // pred_fallthru
      _
    %236 = vsyncpa [#allocation3], 1

// kernel: patch_embed_forward.1
$region0: #{patch_embed_forward.1}
  #allocation0 [shape = 'u32[]', space=smem, size = 0x4, offset = 0x4, fixed_abs, tag = 'smem constant byte address 0x4 - core index']
  #allocation1 [shape = 'u32[144,128]{1,0:T(1,128)}', space=vmem, size = 0x12000, scoped, tag = 'internal scratch']
  %s0 = inlined_call_operand.vmem [shape: bf16[8,256], index: 0, kind: input, shape index: {}]
  %s1 = inlined_call_operand.vmem [shape: bf16[256,128], index: 1, kind: input, shape index: {}]
  %s2 = inlined_call_operand.vmem [shape: f32[8,128], index: 2, kind: input, shape index: {}]
  %s3 = inlined_call_operand.hbm [shape: f32[8,128], index: 3, kind: output, shape index: {}]
  %s4 = sld [smem:[#allocation0]]
  $region22: #{patch_embed_forward.1} parent=0
    _
  %s6 = ssub.s32 1, %s4
  %s7 = scalar_select 0, %s6, %s4
  $region1: #{patch_embed_forward.1} parent=0
    #allocation2 [shape = 'u8[4096]{0}', space=vmem, size = 0x1000, scoped, tag = 'output window, operand 0, single buffered']
    #allocation3 [shape = 's32[1]{0}', space=sflag, size = 0x4, scoped, tag = 'scoped memory for patch_embed_forward.1']
    %8 = vsyncpa [#allocation3], 0
    // Predicated region
    $region2: #{patch_embed_forward.1} parent=1 // pred_check
      _
    $region3: #{patch_embed_forward.1} parent=1 // pred_check_branch
      %10 = sbr.rel (0) target = $region5
    $region4: #{patch_embed_forward.1} parent=1 // pred_region
      _
    $region5: #{patch_embed_forward.1} parent=1 // pred_fallthru
      _
    // Predicated region
    $region6: #{patch_embed_forward.1} parent=1 // pred_check
      _
    $region7: #{patch_embed_forward.1} parent=1 // pred_check_branch
      %12 = sbr.rel (0) target = $region9
    $region8: #{patch_embed_forward.1} parent=1 // pred_region
      _
    $region9: #{patch_embed_forward.1} parent=1 // pred_fallthru
      _
    // Predicated region
    $region10: #{patch_embed_forward.1} parent=1 // pred_check
      _
    $region11: #{patch_embed_forward.1} parent=1 // pred_check_branch
      %14 = sbr.rel (0) target = $region13
    $region12: #{patch_embed_forward.1} parent=1 // pred_region
      _
    $region13: #{patch_embed_forward.1} parent=1 // pred_fallthru
      _
    %v16 = vld [vmem:[%s0] sm:$0xff]
    %v17 = vld [vmem:[%s1] sm:$0xf]
    %v18 = vld [vmem:[%s1 + $0x4] sm:$0xf]
    %v19 = vld [vmem:[%s1 + $0x8] sm:$0xf]
    %v20 = vld [vmem:[%s1 + $0xc] sm:$0xf]
    %v21 = vld [vmem:[%s1 + $0x10] sm:$0xf]
    %v22 = vld [vmem:[%s1 + $0x14] sm:$0xf]
    %v23 = vld [vmem:[%s1 + $0x18] sm:$0xf]
    %v24 = vld [vmem:[%s1 + $0x1c] sm:$0xf]
    %v25 = vld [vmem:[%s1 + $0x20] sm:$0xf]
    %v26 = vld [vmem:[%s1 + $0x24] sm:$0xf]
    %v27 = vld [vmem:[%s1 + $0x28] sm:$0xf]
    %v28 = vld [vmem:[%s1 + $0x2c] sm:$0xf]
    %v29 = vld [vmem:[%s1 + $0x30] sm:$0xf]
    %v30 = vld [vmem:[%s1 + $0x34] sm:$0xf]
    %v31 = vld [vmem:[%s1 + $0x38] sm:$0xf]
    %v32 = vld [vmem:[%s1 + $0x3c] sm:$0xf]
    %v33 = vld [vmem:[%s1 + $0x40] sm:$0xf]
    %v34 = vld [vmem:[%s1 + $0x44] sm:$0xf]
    %v35 = vld [vmem:[%s1 + $0x48] sm:$0xf]
    %v36 = vld [vmem:[%s1 + $0x4c] sm:$0xf]
    %v37 = vld [vmem:[%s1 + $0x50] sm:$0xf]
    %v38 = vld [vmem:[%s1 + $0x54] sm:$0xf]
    %v39 = vld [vmem:[%s1 + $0x58] sm:$0xf]
    %v40 = vld [vmem:[%s1 + $0x5c] sm:$0xf]
    %v41 = vld [vmem:[%s1 + $0x60] sm:$0xf]
    %v42 = vld [vmem:[%s1 + $0x64] sm:$0xf]
    %v43 = vld [vmem:[%s1 + $0x68] sm:$0xf]
    %v44 = vld [vmem:[%s1 + $0x6c] sm:$0xf]
    %v45 = vld [vmem:[%s1 + $0x70] sm:$0xf]
    %v46 = vld [vmem:[%s1 + $0x74] sm:$0xf]
    %v47 = vld [vmem:[%s1 + $0x78] sm:$0xf]
    %v48 = vld [vmem:[%s1 + $0x7c] sm:$0xf]
    %v49 = vld [vmem:[%s2] sm:$0xff]
    %v50 = vlaneseq
    %v51 = vshrl.u32 %v50, 7
    %v52 = vsub.s32 0, %v51
    %v53 = vrot.slane %v49, %v52
    %v55 = vunpack.c.l.b16 %v16
    %v56 = vunpack.c.h.b16 %v16
    %v57 = vpack.c.b16 %v55, %v55
    %v58 = vpack.c.b16 %v56, %v56
    %v93 = vunpack.c.l.b16 %v17
    %v94 = vunpack.c.l.b16 %v18
    %v95 = vunpack.c.l.b16 %v19
    %v96 = vunpack.c.l.b16 %v20
    %v97 = vunpack.c.l.b16 %v21
    %v98 = vunpack.c.l.b16 %v22
    %v99 = vunpack.c.l.b16 %v23
    %v100 = vunpack.c.l.b16 %v24
    %v101 = vunpack.c.l.b16 %v25
    %v102 = vunpack.c.l.b16 %v26
    %v103 = vunpack.c.l.b16 %v27
    %v104 = vunpack.c.l.b16 %v28
    %v105 = vunpack.c.l.b16 %v29
    %v106 = vunpack.c.l.b16 %v30
    %v107 = vunpack.c.l.b16 %v31
    %v108 = vunpack.c.l.b16 %v32
    %v109 = vunpack.c.l.b16 %v33
    %v110 = vunpack.c.l.b16 %v34
    %v111 = vunpack.c.l.b16 %v35
    %v112 = vunpack.c.l.b16 %v36
    %v113 = vunpack.c.l.b16 %v37
    %v114 = vunpack.c.l.b16 %v38
    %v115 = vunpack.c.l.b16 %v39
    %v116 = vunpack.c.l.b16 %v40
    %v117 = vunpack.c.l.b16 %v41
    %v118 = vunpack.c.l.b16 %v42
    %v119 = vunpack.c.l.b16 %v43
    %v120 = vunpack.c.l.b16 %v44
    %v121 = vunpack.c.l.b16 %v45
    %v122 = vunpack.c.l.b16 %v46
    %v123 = vunpack.c.l.b16 %v47
    %v124 = vunpack.c.l.b16 %v48
    %v125 = vpack.c.b16 %v94, %v93
    %v126 = vpack.c.b16 %v96, %v95
    %v127 = vpack.c.b16 %v98, %v97
    %v128 = vpack.c.b16 %v100, %v99
    %v129 = vpack.c.b16 %v102, %v101
    %v130 = vpack.c.b16 %v104, %v103
    %v131 = vpack.c.b16 %v106, %v105
    %v132 = vpack.c.b16 %v108, %v107
    %v133 = vpack.c.b16 %v110, %v109
    %v134 = vpack.c.b16 %v112, %v111
    %v135 = vpack.c.b16 %v114, %v113
    %v136 = vpack.c.b16 %v116, %v115
    %v137 = vpack.c.b16 %v118, %v117
    %v138 = vpack.c.b16 %v120, %v119
    %v139 = vpack.c.b16 %v122, %v121
    %v140 = vpack.c.b16 %v124, %v123
    %157 = vmatprep.subr.bf16.mxu0 0
    %158 = vmatpush1.bf16.msra.mxu0 %v125
    %159 = vmatprep.subr.bf16.mxu0 0
    %160 = vmatpush1.bf16.msra.mxu0 %v126
    %161 = vmatprep.subr.bf16.mxu0 0
    %162 = vmatpush1.bf16.msra.mxu0 %v127
    %163 = vmatprep.subr.bf16.mxu0 0
    %164 = vmatpush1.bf16.msra.mxu0 %v128
    %165 = vmatprep.subr.bf16.mxu0 0
    %166 = vmatpush1.bf16.msra.mxu0 %v129
    %167 = vmatprep.subr.bf16.mxu0 0
    %168 = vmatpush1.bf16.msra.mxu0 %v130
    %169 = vmatprep.subr.bf16.mxu0 0
    %170 = vmatpush1.bf16.msra.mxu0 %v131
    %171 = vmatprep.subr.bf16.mxu0 0
    %172 = vmatpush1.bf16.msra.mxu0 %v132
    %173 = vmatprep.subr.bf16.mxu0 0
    %174 = vmatpush1.bf16.msra.mxu0 %v133
    %175 = vmatprep.subr.bf16.mxu0 0
    %176 = vmatpush1.bf16.msra.mxu0 %v134
    %177 = vmatprep.subr.bf16.mxu0 0
    %178 = vmatpush1.bf16.msra.mxu0 %v135
    %179 = vmatprep.subr.bf16.mxu0 0
    %180 = vmatpush1.bf16.msra.mxu0 %v136
    %181 = vmatprep.subr.bf16.mxu0 0
    %182 = vmatpush1.bf16.msra.mxu0 %v137
    %183 = vmatprep.subr.bf16.mxu0 0
    %184 = vmatpush1.bf16.msra.mxu0 %v138
    %185 = vmatprep.subr.bf16.mxu0 0
    %186 = vmatpush1.bf16.msra.mxu0 %v139
    %187 = vmatprep.subr.bf16.mxu0 0
    %188 = vmatpush1.bf16.msra.mxu0 %v140
    %189 = vmatprep.mubr.bf16.mxu0 %v58
    %190 = vmatmul.mubr.bf16.gmra.mrb[0].mxu0 %v57
    %v191 = vpop.f32.mrb[0].mxu0
    %v192 = vadd.f32 %v53, %v191
    %v193 = vpop.f32.mrb[0].mxu0
    %v194 = vpop.f32.mrb[0].mxu0
    %v195 = vpop.f32.mrb[0].mxu0
    %196 = vdwg.mxu0
    %197 = vadd.xlane.f32.xlu0 %v192
    %v198 = vpop.xlane.xlu0 %197
    %v199 = vmul.f32 %v198, 0.03125
    %v200 = vsub.f32 %v192, %v199
    %v201 = vlaneseq
    %v202 = vand.u32 %v201, 127
    %vm203 = vcmp.lt.s32.totalorder %v202, 32
    %v204 = vsel %vm203, %v200, 0.0
    %v205 = vmul.f32 %v204, %v204
    %206 = vadd.xlane.f32.xlu0 %v205
    %v207 = vpop.xlane.xlu0 %206
    %v208 = vmul.f32 %v207, 0.03125
    %v209 = vadd.f32 %v208, 1e-05
    %v210 = vrsqrt.pop %v209
    %v211 = vmul.f32 %v204, %v210
    %v212 = vlaneseq
    %v213 = vshrl.u32 %v212, 7
    %v214 = vsub.s32 1, %v213
    %v215 = vrot.slane %v49, %v214
    %v216 = vmul.f32 %v211, %v215
    %v217 = vlaneseq
    %v218 = vshrl.u32 %v217, 7
    %v219 = vsub.s32 2, %v218
    %v220 = vrot.slane %v49, %v219
    %v221 = vadd.f32 %v216, %v220
    %222 = vst [vmem:[#allocation2] sm:$0xff] %v221
    // Predicated region
    $region14: #{patch_embed_forward.1} parent=1 // pred_check
      _
    $region15: #{patch_embed_forward.1} parent=1 // pred_check_branch
      %224 = sbr.rel (0) target = $region17
    $region16: #{patch_embed_forward.1} parent=1 // pred_region
      %s226 = ssub.s32 128, 128
      %227 = vsyncadd [#allocation3], %s226
      %s229 = sshll.u32 [#allocation2], 4
      %s230 = int_to_ptr.vmem [resolvable:$true] %s229
      %232 = dma.vmem_to_hbm [thread:$0]  %s230, 128, %s3, [#allocation3]
    $region17: #{patch_embed_forward.1} parent=1 // pred_fallthru
      _
    // Predicated region
    $region18: #{patch_embed_forward.1} parent=1 // pred_check
      _
    $region19: #{patch_embed_forward.1} parent=1 // pred_check_branch
      %234 = sbr.rel (0) target = $region21
    $region20: #{patch_embed_forward.1} parent=1 // pred_region
      %235 = dma.done [#allocation3], 128
    $region21: #{patch_embed_forward.1} parent=1 // pred_fallthru
      _
    %236 = vsyncpa [#allocation3], 1

</llo_original>
